<compile_context>
chip_gen: v7x
topology: tpu7x:2x2x1
jax: 0.10.0
libtpu: 0.0.40
codegen_flags: <defaults>
</compile_context>

<pallas_src>
import functools

import jax
import jax.numpy as jnp
from jax.experimental import pallas as pl
from jax.experimental.pallas import tpu as pltpu


def _round_up(n, m):
    return ((n + m - 1) // m) * m


def _pick_act_dtype():
    """bf16 tanh/intermediates on v6e/v7x (bf16 VPU/EUP); f32 on v5e and older."""
    try:
        kind = jax.devices()[0].device_kind.lower()
    except Exception:
        return jnp.float32
    if "v6" in kind or "v7" in kind:
        return jnp.bfloat16
    return jnp.float32


def _choose_tile_b(B, max_tile=512):
    """Right-size the batch tile: no huge zero-padding for small B; for large B
    make sure there are >= 2 grid steps so "parallel" shards across v7x TCs."""
    tb = min(max_tile, _round_up(B, 16))
    if B > 256:
        tb = min(tb, _round_up((B + 1) // 2, 16))
    return max(tb, 16)


def wgan_d_kernel(x_ref, w1_ref, w2_ref, w3_ref, b_ref, o_ref, *, act_dtype):
    """Fused D(x) on one batch tile.

    x_ref : (tile_b, in_size) f32 (native width, cast to bf16 in-kernel)
    w*_ref: [fan_in, fan_out] bf16 weights (native, unpadded shapes)
    b_ref : (3, nmax) f32; row i = bias of layer i+1, zero-padded to nmax cols
    o_ref : (tile_b, out_size) f32
    """
    n1 = w1_ref.shape[1]
    n2 = w2_ref.shape[1]
    n3 = w3_ref.shape[1]

    # Cast activations to the MXU operand dtype here (no wrapper pad/cast pass).
    x = x_ref[...].astype(w1_ref.dtype)

    # layer 1: Linear(in -> 2h) + Tanh   (bf16 MXU operands, f32 accumulate)
    h1 = jnp.tanh(
        (jnp.dot(x, w1_ref[...], preferred_element_type=jnp.float32)
         + b_ref[0:1, :n1]).astype(act_dtype))
    # layer 2: Linear(2h -> h) + Tanh
    h2 = jnp.tanh(
        (jnp.dot(h1.astype(w2_ref.dtype), w2_ref[...],
                 preferred_element_type=jnp.float32)
         + b_ref[1:2, :n2]).astype(act_dtype))
    # layer 3 (map3): Linear(h -> out), no activation
    out = (jnp.dot(h2.astype(w3_ref.dtype), w3_ref[...],
                   preferred_element_type=jnp.float32)
           + b_ref[2:3, :n3])
    o_ref[...] = out.astype(o_ref.dtype)


def init_params(key, in_size, h_size, out_size):
    """Deterministic init mimicking nn.Linear's U(-1/sqrt(fan_in), 1/sqrt(fan_in))."""
    keys = jax.random.split(key, 6)

    def lin(kw, kb, fan_in, fan_out):
        bound = 1.0 / jnp.sqrt(fan_in)
        w = jax.random.uniform(kw, (fan_in, fan_out), jnp.float32, -bound, bound)
        b = jax.random.uniform(kb, (1, fan_out), jnp.float32, -bound, bound)
        return w, b

    w1, b1 = lin(keys[0], keys[1], in_size, h_size * 2)
    w2, b2 = lin(keys[2], keys[3], h_size * 2, h_size)
    w3, b3 = lin(keys[4], keys[5], h_size, out_size)
    return {"w1": w1, "b1": b1, "w2": w2, "b2": b2, "w3": w3, "b3": b3}


def pack_params(params, compute_dtype=jnp.bfloat16):
    """One-time: cast weights to bf16 MXU operands and stack the three biases
    into a single (3, nmax) f32 array (one DMA instead of three)."""
    w1 = params["w1"].astype(compute_dtype)
    w2 = params["w2"].astype(compute_dtype)
    w3 = params["w3"].astype(compute_dtype)
    n1, n2, n3 = w1.shape[1], w2.shape[1], w3.shape[1]
    nmax = max(n1, n2, n3)
    bias = jnp.zeros((3, nmax), jnp.float32)
    bias = bias.at[0, :n1].set(params["b1"].reshape(-1).astype(jnp.float32))
    bias = bias.at[1, :n2].set(params["b2"].reshape(-1).astype(jnp.float32))
    bias = bias.at[2, :n3].set(params["b3"].reshape(-1).astype(jnp.float32))
    return {"w1": w1, "w2": w2, "w3": w3, "bias": bias,
            "in_size": w1.shape[0], "out_size": n3,
            "act_dtype": _pick_act_dtype()}


def _xla_forward(x, packed):
    """Tiny-batch fast path: plain XLA matmul chain (same math as the kernel)."""
    act = packed["act_dtype"]
    w1, w2, w3, bias = packed["w1"], packed["w2"], packed["w3"], packed["bias"]
    n1, n2, n3 = w1.shape[1], w2.shape[1], w3.shape[1]
    h1 = jnp.tanh((jnp.dot(x.astype(w1.dtype), w1,
                           preferred_element_type=jnp.float32)
                   + bias[0:1, :n1]).astype(act))
    h2 = jnp.tanh((jnp.dot(h1.astype(w2.dtype), w2,
                           preferred_element_type=jnp.float32)
                   + bias[1:2, :n2]).astype(act))
    return (jnp.dot(h2.astype(w3.dtype), w3, preferred_element_type=jnp.float32)
            + bias[2:3, :n3])


def wgan_discriminator_forward(x, packed, *, max_tile_b=512, allow_fast_path=True):
    """x: [B, in_size] f32. packed: output of pack_params. Returns [B, out_size] f32."""
    B, in_size = x.shape
    assert in_size == packed["in_size"]

    if allow_fast_path and B <= 64:
        # pallas_call fixed overhead exceeds the whole computation at tiny B.
        return _xla_forward(x, packed)

    w1, w2, w3, bias = packed["w1"], packed["w2"], packed["w3"], packed["bias"]
    n1, n2, n3 = w1.shape[1], w2.shape[1], w3.shape[1]
    nmax = bias.shape[1]
    act_dtype = packed["act_dtype"]

    tile_b = _choose_tile_b(B, max_tile_b)
    bp = _round_up(B, tile_b)
    x_in = x if bp == B else jnp.pad(x, ((0, bp - B), (0, 0)))
    grid = (bp // tile_b,)

    # Explicit VMEM budget: x/out tiles double-buffered, bf16 weights + bias
    # resident single-buffered, plus compiler-materialized h1/h2 intermediates.
    act_bytes = max(jnp.dtype(act_dtype).itemsize, 2)
    est = (2 * tile_b * in_size * 4                       # x tiles (f32, 2 bufs)
           + 2 * tile_b * n3 * 4                          # out tiles (f32, 2 bufs)
           + (in_size * n1 + n1 * n2 + n2 * n3) * 2       # resident bf16 weights
           + 3 * nmax * 4                                 # stacked bias
           + tile_b * (n1 + n2) * 4                       # f32 matmul results
           + tile_b * (n1 + n2) * act_bytes)              # h1/h2 after cast
    headroom = 2 << 20
    # TODO(synk): for very large h_size (resident weights approaching ~40 MiB),
    # stream w2 with a K-tiled BlockSpec + f32 accumulator instead of residency.
    assert est + headroom < (40 << 20), \
        f"resident VMEM set ({est} B) too large for v7x (64 MiB)"
    vmem_limit = int(min(max(2 * (est + headroom), 32 << 20), 56 << 20))

    kernel = pl.pallas_call(
        functools.partial(wgan_d_kernel, act_dtype=act_dtype),
        out_shape=jax.ShapeDtypeStruct((bp, n3), jnp.float32),
        grid_spec=pltpu.PrefetchScalarGridSpec(
            num_scalar_prefetch=0,
            grid=grid,
            in_specs=[
                # activations: tiled over batch (double-buffered), native width
                pl.BlockSpec((tile_b, in_size), lambda i: (i, 0)),
                # grid-invariant weights / stacked bias: single-buffered residents
                pl.BlockSpec((in_size, n1), lambda i: (0, 0),
                             pipeline_mode=pl.Buffered(1)),
                pl.BlockSpec((n1, n2), lambda i: (0, 0),
                             pipeline_mode=pl.Buffered(1)),
                pl.BlockSpec((n2, n3), lambda i: (0, 0),
                             pipeline_mode=pl.Buffered(1)),
                pl.BlockSpec((3, nmax), lambda i: (0, 0),
                             pipeline_mode=pl.Buffered(1)),
            ],
            out_specs=pl.BlockSpec((tile_b, n3), lambda i: (i, 0)),
        ),
        compiler_params=pltpu.CompilerParams(
            dimension_semantics=("parallel",),
            vmem_limit_bytes=vmem_limit,
        ),
    )
    out = kernel(x_in, w1, w2, w3, bias)
    return out if bp == B else out[:B]


def reference_forward(x, p, act_dtype, compute_dtype=jnp.bfloat16):
    """Pure-JAX reference mirroring the kernel's bf16-operand / f32-accumulate /
    act_dtype-tanh math."""
    w1 = p["w1"].astype(compute_dtype)
    w2 = p["w2"].astype(compute_dtype)
    w3 = p["w3"].astype(compute_dtype)
    h1 = jnp.tanh((jnp.dot(x.astype(compute_dtype), w1,
                           preferred_element_type=jnp.float32)
                   + p["b1"]).astype(act_dtype))
    h2 = jnp.tanh((jnp.dot(h1.astype(compute_dtype), w2,
                           preferred_element_type=jnp.float32)
                   + p["b2"]).astype(act_dtype))
    return jnp.dot(h2.astype(compute_dtype), w3,
                   preferred_element_type=jnp.float32) + p["b3"]


if __name__ == "__main__":
    # nn_size_lst = [in_size, h_size, out_size]
    in_size, h_size, out_size = 32, 32, 1

    key = jax.random.PRNGKey(0)
    k_x1, k_x2, k_p = jax.random.split(key, 3)
    params = init_params(k_p, in_size, h_size, out_size)
    packed = pack_params(params)
    act_dtype = packed["act_dtype"]

    # --- small batch: single right-sized tile (no 32x batch padding) ---
    x_small = jax.random.normal(k_x1, (8, in_size), dtype=jnp.float32)
    out_small = wgan_discriminator_forward(x_small, packed, allow_fast_path=False)
    out_small = jax.block_until_ready(out_small)
    ref_small = reference_forward(x_small, params, act_dtype)
    assert out_small.shape == (8, out_size), out_small.shape
    err_small = float(jnp.max(jnp.abs(out_small - ref_small)))
    assert err_small < 2e-2, err_small

    # --- larger batch: multi-step grid (shards across TensorCores on v7x) ---
    x_big = jax.random.normal(k_x2, (384, in_size), dtype=jnp.float32)
    out_big = jax.block_until_ready(
        wgan_discriminator_forward(x_big, packed, allow_fast_path=False))
    ref_big = reference_forward(x_big, params, act_dtype)
    assert out_big.shape == (384, out_size), out_big.shape
    err_big = float(jnp.max(jnp.abs(out_big - ref_big)))
    assert err_big < 2e-2, err_big

    print("KERNEL_OK")
</pallas_src>

<mosaic_0001>
module attributes {stable_mosaic.version = 11 : i64} {
  func.func @wgan_d_kernel(%arg0: i32, %arg1: memref<16x32xf32, #tpu.memory_space<vmem>>, %arg2: memref<32x64xbf16, #tpu.memory_space<vmem>>, %arg3: memref<64x32xbf16, #tpu.memory_space<vmem>>, %arg4: memref<32x1xbf16, #tpu.memory_space<vmem>>, %arg5: memref<3x64xf32, #tpu.memory_space<vmem>>, %arg6: memref<16x1xf32, #tpu.memory_space<vmem>>) attributes {dimension_semantics = [#tpu.dimension_semantics<parallel>], iteration_bounds = array<i64: 1>, scalar_prefetch = 0 : i64, scratch_operands = 0 : i64, tpu.core_type = #tpu.core_type<tc>, window_params = [{transform_indices = @transform_0, window_bounds = array<i64: 16, 32>}, {pipeline_mode = #tpu.pipeline_mode<synchronous>, transform_indices = @transform_1, window_bounds = array<i64: 32, 64>}, {pipeline_mode = #tpu.pipeline_mode<synchronous>, transform_indices = @transform_2, window_bounds = array<i64: 64, 32>}, {pipeline_mode = #tpu.pipeline_mode<synchronous>, transform_indices = @transform_3, window_bounds = array<i64: 32, 1>}, {pipeline_mode = #tpu.pipeline_mode<synchronous>, transform_indices = @transform_4, window_bounds = array<i64: 3, 64>}, {transform_indices = @transform_5, window_bounds = array<i64: 16, 1>}]} {
    %c0 = arith.constant 0 : index
    %c0_0 = arith.constant 0 : index
    %0 = vector.load %arg1[%c0, %c0_0] : memref<16x32xf32, #tpu.memory_space<vmem>>, vector<16x32xf32>
    %1 = arith.truncf %0 : vector<16x32xf32> to vector<16x32xbf16>
    %c0_1 = arith.constant 0 : index
    %c0_2 = arith.constant 0 : index
    %2 = vector.load %arg2[%c0_1, %c0_2] : memref<32x64xbf16, #tpu.memory_space<vmem>>, vector<32x64xbf16>
    %cst = arith.constant dense<0.000000e+00> : vector<16x64xf32>
    %3 = tpu.matmul %1, %2, %cst {dimension_numbers = #tpu.dot_dimension_numbers<[1], [0], [0], [1], [0, 0, 1, 1], [], []>} : vector<16x32xbf16>, vector<32x64xbf16>, vector<16x64xf32> -> vector<16x64xf32>
    %c0_3 = arith.constant 0 : index
    %c0_4 = arith.constant 0 : index
    %4 = vector.load %arg5[%c0_3, %c0_4] : memref<3x64xf32, #tpu.memory_space<vmem>>, vector<1x64xf32>
    %5 = vector.broadcast %4 : vector<1x64xf32> to vector<16x64xf32>
    %6 = arith.addf %3, %5 : vector<16x64xf32>
    %7 = math.tanh %6 : vector<16x64xf32>
    %8 = arith.truncf %7 : vector<16x64xf32> to vector<16x64xbf16>
    %c0_5 = arith.constant 0 : index
    %c0_6 = arith.constant 0 : index
    %9 = vector.load %arg3[%c0_5, %c0_6] : memref<64x32xbf16, #tpu.memory_space<vmem>>, vector<64x32xbf16>
    %cst_7 = arith.constant dense<0.000000e+00> : vector<16x32xf32>
    %10 = tpu.matmul %8, %9, %cst_7 {dimension_numbers = #tpu.dot_dimension_numbers<[1], [0], [0], [1], [0, 0, 1, 1], [], []>} : vector<16x64xbf16>, vector<64x32xbf16>, vector<16x32xf32> -> vector<16x32xf32>
    %c1 = arith.constant 1 : index
    %c0_8 = arith.constant 0 : index
    %11 = vector.load %arg5[%c1, %c0_8] : memref<3x64xf32, #tpu.memory_space<vmem>>, vector<1x32xf32>
    %12 = vector.broadcast %11 : vector<1x32xf32> to vector<16x32xf32>
    %13 = arith.addf %10, %12 : vector<16x32xf32>
    %14 = math.tanh %13 : vector<16x32xf32>
    %15 = arith.truncf %14 : vector<16x32xf32> to vector<16x32xbf16>
    %c0_9 = arith.constant 0 : index
    %c0_10 = arith.constant 0 : index
    %16 = vector.load %arg4[%c0_9, %c0_10] : memref<32x1xbf16, #tpu.memory_space<vmem>>, vector<32x1xbf16>
    %cst_11 = arith.constant dense<0.000000e+00> : vector<16x1xf32>
    %17 = tpu.matmul %15, %16, %cst_11 {dimension_numbers = #tpu.dot_dimension_numbers<[1], [0], [0], [1], [0, 0, 1, 1], [], []>} : vector<16x32xbf16>, vector<32x1xbf16>, vector<16x1xf32> -> vector<16x1xf32>
    %c2 = arith.constant 2 : index
    %c0_12 = arith.constant 0 : index
    %18 = vector.load %arg5[%c2, %c0_12] : memref<3x64xf32, #tpu.memory_space<vmem>>, vector<1x1xf32>
    %19 = vector.broadcast %18 : vector<1x1xf32> to vector<16x1xf32>
    %20 = arith.addf %17, %19 : vector<16x1xf32>
    %c0_13 = arith.constant 0 : index
    %c0_14 = arith.constant 0 : index
    %21 = vector.load %arg6[%c0_13, %c0_14] : memref<16x1xf32, #tpu.memory_space<vmem>>, vector<16x1xf32>
    tpu.vector_store %arg6[%c0_13, %c0_14], %20 {strides = array<i32>} : memref<16x1xf32, #tpu.memory_space<vmem>>, vector<16x1xf32>,
    return
  }
  func.func @transform_0(%arg0: i32) -> (i32, i32) {
    %c0_i32 = arith.constant 0 : i32
    %c0_i32_0 = arith.constant 0 : i32
    return %arg0, %c0_i32 : i32, i32
  }
  func.func @transform_1(%arg0: i32) -> (i32, i32) {
    %c0_i32 = arith.constant 0 : i32
    %c0_i32_0 = arith.constant 0 : i32
    %c0_i32_1 = arith.constant 0 : i32
    return %c0_i32, %c0_i32_0 : i32, i32
  }
  func.func @transform_2(%arg0: i32) -> (i32, i32) {
    %c0_i32 = arith.constant 0 : i32
    %c0_i32_0 = arith.constant 0 : i32
    %c0_i32_1 = arith.constant 0 : i32
    return %c0_i32, %c0_i32_0 : i32, i32
  }
  func.func @transform_3(%arg0: i32) -> (i32, i32) {
    %c0_i32 = arith.constant 0 : i32
    %c0_i32_0 = arith.constant 0 : i32
    %c0_i32_1 = arith.constant 0 : i32
    return %c0_i32, %c0_i32_0 : i32, i32
  }
  func.func @transform_4(%arg0: i32) -> (i32, i32) {
    %c0_i32 = arith.constant 0 : i32
    %c0_i32_0 = arith.constant 0 : i32
    %c0_i32_1 = arith.constant 0 : i32
    return %c0_i32, %c0_i32_0 : i32, i32
  }
  func.func @transform_5(%arg0: i32) -> (i32, i32) {
    %c0_i32 = arith.constant 0 : i32
    %c0_i32_0 = arith.constant 0 : i32
    return %arg0, %c0_i32 : i32, i32
  }
}

</mosaic_0001>

<llo_original>
// kernel: tpu_custom_call.1
$region0: #{tpu_custom_call.1}
  #allocation0 [shape = 'u32[]', space=smem, size = 0x4, offset = 0x4, fixed_abs, tag = 'smem constant byte address 0x4 - core index']
  #allocation1 [shape = 'u32[144,128]{1,0:T(1,128)}', space=vmem, size = 0x12000, scoped, tag = 'internal scratch']
  %s0 = inlined_call_operand.vmem [shape: f32[16,32], index: 0, kind: input, shape index: {}]
  %s1 = inlined_call_operand.vmem [shape: bf16[32,64], index: 1, kind: input, shape index: {}]
  %s2 = inlined_call_operand.vmem [shape: bf16[64,32], index: 2, kind: input, shape index: {}]
  %s3 = inlined_call_operand.vmem [shape: bf16[32,1], index: 3, kind: input, shape index: {}]
  %s4 = inlined_call_operand.vmem [shape: f32[3,64], index: 4, kind: input, shape index: {}]
  %s5 = inlined_call_operand.vmem [shape: f32[16,1], index: 5, kind: output, shape index: {}]
  %s6 = sld [smem:[#allocation0]]
  $region30: #{tpu_custom_call.1} parent=0
    _
  %s8 = ssub.s32 1, %s6
  %s9 = scalar_select 0, %s8, %s6
  // Predicated region
  $region2: #{tpu_custom_call.1} parent=0 // pred_check
    _
  $region3: #{tpu_custom_call.1} parent=0 // pred_check_branch
    %11 = sbr.rel (0) target = $region5
  $region4: #{tpu_custom_call.1} parent=0 // pred_region
    _
  $region5: #{tpu_custom_call.1} parent=0 // pred_fallthru
    _
  // Predicated region
  $region6: #{tpu_custom_call.1} parent=0 // pred_check
    _
  $region7: #{tpu_custom_call.1} parent=0 // pred_check_branch
    %13 = sbr.rel (0) target = $region9
  $region8: #{tpu_custom_call.1} parent=0 // pred_region
    _
  $region9: #{tpu_custom_call.1} parent=0 // pred_fallthru
    _
  // Predicated region
  $region10: #{tpu_custom_call.1} parent=0 // pred_check
    _
  $region11: #{tpu_custom_call.1} parent=0 // pred_check_branch
    %15 = sbr.rel (0) target = $region13
  $region12: #{tpu_custom_call.1} parent=0 // pred_region
    _
  $region13: #{tpu_custom_call.1} parent=0 // pred_fallthru
    _
  // Predicated region
  $region14: #{tpu_custom_call.1} parent=0 // pred_check
    _
  $region15: #{tpu_custom_call.1} parent=0 // pred_check_branch
    %17 = sbr.rel (0) target = $region17
  $region16: #{tpu_custom_call.1} parent=0 // pred_region
    _
  $region17: #{tpu_custom_call.1} parent=0 // pred_fallthru
    _
  // Predicated region
  $region18: #{tpu_custom_call.1} parent=0 // pred_check
    _
  $region19: #{tpu_custom_call.1} parent=0 // pred_check_branch
    %19 = sbr.rel (0) target = $region21
  $region20: #{tpu_custom_call.1} parent=0 // pred_region
    _
  $region21: #{tpu_custom_call.1} parent=0 // pred_fallthru
    _
  %v21 = vld [vmem:[%s0] sm:$0xff]
  %v22 = vld [vmem:[%s0 + $0x8] sm:$0xff]
  %v23 = vpack.c.bf16 %v22, %v21
  %v24 = vld [vmem:[%s1] sm:$0xf]
  %v25 = vld [vmem:[%s1 + $0x4] sm:$0xf]
  %v26 = vld [vmem:[%s1 + $0x8] sm:$0xf]
  %v27 = vld [vmem:[%s1 + $0xc] sm:$0xf]
  %v28 = vld [vmem:[%s4] sm:$0x1]
  %v29 = vlaneseq
  %v30 = vshrl.u32 %v29, 7
  %v31 = vsub.s32 0, %v30
  %v32 = vrot.slane %v28, %v31
  %v37 = vunpack.c.l.b16 %v24
  %v38 = vunpack.c.l.b16 %v25
  %v39 = vunpack.c.l.b16 %v26
  %v40 = vunpack.c.l.b16 %v27
  %v41 = vpack.c.b16 %v38, %v37
  %v42 = vpack.c.b16 %v40, %v39
  %vm45 = vcmask 261120
  %v47 = vsel %vm45, %v23, 0
  %49 = vmatprep.subr.bf16.mxu0 0
  %50 = vmatpush1.bf16.msra.mxu0 %v41
  %51 = vmatprep.subr.bf16.mxu0 0
  %52 = vmatpush1.bf16.msra.mxu0 %v42
  %53 = vmatprep.subr.bf16.mxu0 0
  %54 = vmatpush1.bf16.msra.mxu0 0
  %55 = vmatprep.subr.bf16.mxu0 0
  %56 = vmatpush1.bf16.msra.mxu0 0
  %57 = vmatprep.subr.bf16.mxu0 0
  %58 = vmatpush1.bf16.msra.mxu0 0
  %59 = vmatprep.subr.bf16.mxu0 0
  %60 = vmatpush1.bf16.msra.mxu0 0
  %61 = vmatprep.subr.bf16.mxu0 0
  %62 = vmatpush1.bf16.msra.mxu0 0
  %63 = vmatprep.subr.bf16.mxu0 0
  %64 = vmatpush1.bf16.msra.mxu0 0
  %65 = vmatprep.subr.bf16.mxu0 0
  %66 = vmatpush1.bf16.msra.mxu0 0
  %67 = vmatprep.subr.bf16.mxu0 0
  %68 = vmatpush1.bf16.msra.mxu0 0
  %69 = vmatprep.subr.bf16.mxu0 0
  %70 = vmatpush1.bf16.msra.mxu0 0
  %71 = vmatprep.subr.bf16.mxu0 0
  %72 = vmatpush1.bf16.msra.mxu0 0
  %73 = vmatprep.subr.bf16.mxu0 0
  %74 = vmatpush1.bf16.msra.mxu0 0
  %75 = vmatprep.subr.bf16.mxu0 0
  %76 = vmatpush1.bf16.msra.mxu0 0
  %77 = vmatprep.subr.bf16.mxu0 0
  %78 = vmatpush1.bf16.msra.mxu0 0
  %79 = vmatprep.subr.bf16.mxu0 0
  %80 = vmatpush1.bf16.msra.mxu0 0
  %81 = vmatprep.mubr.bf16.mxu0 0
  %82 = vmatmul.mubr.bf16.gmra.mrb[0].mxu0 %v47
  %v83 = vpop.f32.mrb[0].mxu0
  %v84 = vadd.f32 %v32, %v83
  %v85 = vpop.f32.mrb[0].mxu0
  %v86 = vpop.f32.mrb[0].mxu0
  %v87 = vadd.f32 %v32, %v86
  %v88 = vpop.f32.mrb[0].mxu0
  %89 = vdwg.mxu0
  %v90 = vtanh.pop %v84
  %v91 = vtanh.pop %v87
  %v92 = vpack.c.bf16 %v91, %v90
  %v93 = vld [vmem:[%s2] sm:$0xf]
  %v94 = vld [vmem:[%s2 + $0x4] sm:$0xf]
  %v95 = vld [vmem:[%s2 + $0x8] sm:$0xf]
  %v96 = vld [vmem:[%s2 + $0xc] sm:$0xf]
  %v97 = vld [vmem:[%s2 + $0x10] sm:$0xf]
  %v98 = vld [vmem:[%s2 + $0x14] sm:$0xf]
  %v99 = vld [vmem:[%s2 + $0x18] sm:$0xf]
  %v100 = vld [vmem:[%s2 + $0x1c] sm:$0xf]
  %v101 = vld [vmem:[%s4 + $0x1] sm:$0x1]
  %v102 = vlaneseq
  %v103 = vshrl.u32 %v102, 7
  %v104 = vsub.s32 0, %v103
  %v105 = vrot.slane %v101, %v104
  %v114 = vunpack.c.l.b16 %v93
  %v115 = vunpack.c.l.b16 %v94
  %v116 = vunpack.c.l.b16 %v95
  %v117 = vunpack.c.l.b16 %v96
  %v118 = vunpack.c.l.b16 %v97
  %v119 = vunpack.c.l.b16 %v98
  %v120 = vunpack.c.l.b16 %v99
  %v121 = vunpack.c.l.b16 %v100
  %v122 = vpack.c.b16 %v115, %v114
  %v123 = vpack.c.b16 %v117, %v116
  %v124 = vpack.c.b16 %v119, %v118
  %v125 = vpack.c.b16 %v121, %v120
  %vm130 = vcmask 523264
  %v132 = vsel %vm130, %v92, 0
  %134 = vmatprep.subr.bf16.mxu0 0
  %135 = vmatpush1.bf16.msra.mxu0 %v122
  %136 = vmatprep.subr.bf16.mxu0 0
  %137 = vmatpush1.bf16.msra.mxu0 %v123
  %138 = vmatprep.subr.bf16.mxu0 0
  %139 = vmatpush1.bf16.msra.mxu0 %v124
  %140 = vmatprep.subr.bf16.mxu0 0
  %141 = vmatpush1.bf16.msra.mxu0 %v125
  %142 = vmatprep.subr.bf16.mxu0 0
  %143 = vmatpush1.bf16.msra.mxu0 0
  %144 = vmatprep.subr.bf16.mxu0 0
  %145 = vmatpush1.bf16.msra.mxu0 0
  %146 = vmatprep.subr.bf16.mxu0 0
  %147 = vmatpush1.bf16.msra.mxu0 0
  %148 = vmatprep.subr.bf16.mxu0 0
  %149 = vmatpush1.bf16.msra.mxu0 0
  %150 = vmatprep.subr.bf16.mxu0 0
  %151 = vmatpush1.bf16.msra.mxu0 0
  %152 = vmatprep.subr.bf16.mxu0 0
  %153 = vmatpush1.bf16.msra.mxu0 0
  %154 = vmatprep.subr.bf16.mxu0 0
  %155 = vmatpush1.bf16.msra.mxu0 0
  %156 = vmatprep.subr.bf16.mxu0 0
  %157 = vmatpush1.bf16.msra.mxu0 0
  %158 = vmatprep.subr.bf16.mxu0 0
  %159 = vmatpush1.bf16.msra.mxu0 0
  %160 = vmatprep.subr.bf16.mxu0 0
  %161 = vmatpush1.bf16.msra.mxu0 0
  %162 = vmatprep.subr.bf16.mxu0 0
  %163 = vmatpush1.bf16.msra.mxu0 0
  %164 = vmatprep.subr.bf16.mxu0 0
  %165 = vmatpush1.bf16.msra.mxu0 0
  %166 = vmatprep.mubr.bf16.mxu0 0
  %167 = vmatmul.mubr.bf16.gmra.mrb[0].mxu0 %v132
  %v168 = vpop.f32.mrb[0].mxu0
  %v169 = vadd.f32 %v105, %v168
  %v170 = vpop.f32.mrb[0].mxu0
  %v171 = vpop.f32.mrb[0].mxu0
  %v172 = vadd.f32 %v105, %v171
  %v173 = vpop.f32.mrb[0].mxu0
  %174 = vdwg.mxu0
  %v175 = vtanh.pop %v169
  %v176 = vtanh.pop %v172
  %v177 = vpack.c.bf16 %v176, %v175
  %v178 = vld [vmem:[%s3] sm:$0xf]
  %v179 = vld [vmem:[%s3 + $0x4] sm:$0xf]
  %v180 = vld [vmem:[%s3 + $0x8] sm:$0xf]
  %v181 = vld [vmem:[%s3 + $0xc] sm:$0xf]
  %v182 = vld [vmem:[%s4 + $0x2] sm:$0x1]
  %v183 = vlaneseq
  %v184 = vshrl.u32 %v183, 7
  %v185 = vsub.s32 0, %v184
  %v186 = vrot.slane %v182, %v185
  %v191 = vunpack.c.l.b16 %v178
  %v192 = vunpack.c.l.b16 %v179
  %v193 = vunpack.c.l.b16 %v180
  %v194 = vunpack.c.l.b16 %v181
  %v195 = vpack.c.b16 %v192, %v191
  %v196 = vpack.c.b16 %v194, %v193
  %v200 = vsel %vm45, %v177, 0
  %202 = vmatprep.subr.bf16.mxu0 0
  %203 = vmatpush1.bf16.msra.mxu0 %v195
  %204 = vmatprep.subr.bf16.mxu0 0
  %205 = vmatpush1.bf16.msra.mxu0 %v196
  %206 = vmatprep.subr.bf16.mxu0 0
  %207 = vmatpush1.bf16.msra.mxu0 0
  %208 = vmatprep.subr.bf16.mxu0 0
  %209 = vmatpush1.bf16.msra.mxu0 0
  %210 = vmatprep.subr.bf16.mxu0 0
  %211 = vmatpush1.bf16.msra.mxu0 0
  %212 = vmatprep.subr.bf16.mxu0 0
  %213 = vmatpush1.bf16.msra.mxu0 0
  %214 = vmatprep.subr.bf16.mxu0 0
  %215 = vmatpush1.bf16.msra.mxu0 0
  %216 = vmatprep.subr.bf16.mxu0 0
  %217 = vmatpush1.bf16.msra.mxu0 0
  %218 = vmatprep.subr.bf16.mxu0 0
  %219 = vmatpush1.bf16.msra.mxu0 0
  %220 = vmatprep.subr.bf16.mxu0 0
  %221 = vmatpush1.bf16.msra.mxu0 0
  %222 = vmatprep.subr.bf16.mxu0 0
  %223 = vmatpush1.bf16.msra.mxu0 0
  %224 = vmatprep.subr.bf16.mxu0 0
  %225 = vmatpush1.bf16.msra.mxu0 0
  %226 = vmatprep.subr.bf16.mxu0 0
  %227 = vmatpush1.bf16.msra.mxu0 0
  %228 = vmatprep.subr.bf16.mxu0 0
  %229 = vmatpush1.bf16.msra.mxu0 0
  %230 = vmatprep.subr.bf16.mxu0 0
  %231 = vmatpush1.bf16.msra.mxu0 0
  %232 = vmatprep.subr.bf16.mxu0 0
  %233 = vmatpush1.bf16.msra.mxu0 0
  %234 = vmatprep.mubr.bf16.mxu0 0
  %235 = vmatmul.mubr.bf16.gmra.mrb[0].mxu0 %v200
  %v236 = vpop.f32.mrb[0].mxu0
  %v237 = vadd.f32 %v186, %v236
  %v238 = vpop.f32.mrb[0].mxu0
  %v239 = vpop.f32.mrb[0].mxu0
  %v240 = vadd.f32 %v186, %v239
  %v241 = vpop.f32.mrb[0].mxu0
  %242 = vdwg.mxu0
  %vm243 = vcmask 7168
  %244 = vst.msk [vmem:[%s5] sm:$0xff] %vm243, %v237
  %245 = vst.msk [vmem:[%s5 + $0x8] sm:$0xff] %vm243, %v240
  // Predicated region
  $region22: #{tpu_custom_call.1} parent=0 // pred_check
    _
  $region23: #{tpu_custom_call.1} parent=0 // pred_check_branch
    %247 = sbr.rel (0) target = $region25
  $region24: #{tpu_custom_call.1} parent=0 // pred_region
    _
  $region25: #{tpu_custom_call.1} parent=0 // pred_fallthru
    _
  // Predicated region
  $region26: #{tpu_custom_call.1} parent=0 // pred_check
    _
  $region27: #{tpu_custom_call.1} parent=0 // pred_check_branch
    %249 = sbr.rel (0) target = $region29
  $region28: #{tpu_custom_call.1} parent=0 // pred_region
    _
  $region29: #{tpu_custom_call.1} parent=0 // pred_fallthru
    _

</llo_original>
